<compile_context>
chip_gen: v7x
topology: tpu7x:2x2x1
jax: 0.10.0
libtpu: 0.0.40
codegen_flags: <defaults>
</compile_context>

<pallas_src>
import functools

import jax
import jax.numpy as jnp
from jax.experimental import pallas as pl
from jax.experimental.pallas import tpu as pltpu


def _round_up(x, m):
    return ((x + m - 1) // m) * m


# ------------------------------- kernels ------------------------------------


def _median_kernel(tri_ref, w_ref, starts_ref, ends_ref, out_ref):
    # tri_ref: (S, S) bf16; w/starts/ends: (Rt, S) native dtype; out_ref: (Rt, 1) f32.
    w = w_ref[...].astype(jnp.float32)
    steps = (starts_ref[...].astype(jnp.float32)
             + ends_ref[...].astype(jnp.float32)) * 0.5
    rt, s = w.shape

    # Cumulative sum along the sample (lane) axis via lower-triangular matmul
    # on the otherwise-idle MXU; tri[j, i] = 1 iff j <= i.
    # Two bf16 passes with an exact operand split (tri is exactly representable
    # in bf16) reproduce the f32 cumsum to ~2^-17 relative error while keeping
    # MXU cost at 2 passes (vs 6 for a HIGHEST-precision f32 dot).
    tri = tri_ref[...]
    w_hi = w.astype(jnp.bfloat16)
    w_lo = (w - w_hi.astype(jnp.float32)).astype(jnp.bfloat16)
    cumw = jnp.dot(w_hi, tri, preferred_element_type=jnp.float32)
    cumw = cumw + jnp.dot(w_lo, tri, preferred_element_type=jnp.float32)

    # torch.searchsorted(cum, 0.5, side='left') == count of elements strictly < 0.5
    idx = jnp.sum((cumw < 0.5).astype(jnp.int32), axis=-1, keepdims=True)
    idx = jnp.clip(idx, 0, s - 1)

    # gather steps[r, idx[r]] via one-hot reduction along lanes (row-local, so
    # ragged-tail garbage rows only affect output rows Pallas discards).
    lane = jax.lax.broadcasted_iota(jnp.int32, (rt, s), 1)
    onehot = (lane == idx).astype(jnp.float32)
    out_ref[...] = jnp.sum(steps * onehot, axis=-1, keepdims=True)


def _expected_kernel(w_ref, starts_ref, ends_ref, out_ref, min_ref, max_ref,
                     *, num_valid_rays, ray_tile):
    eps = 1e-10
    w = w_ref[...].astype(jnp.float32)
    steps = (starts_ref[...].astype(jnp.float32)
             + ends_ref[...].astype(jnp.float32)) * 0.5
    num = jnp.sum(w * steps, axis=-1, keepdims=True)
    den = jnp.sum(w, axis=-1, keepdims=True) + eps
    out_ref[...] = num / den

    # Per-tile clip bounds.  The ragged tail (rows >= num_valid_rays in the last
    # tile) holds unspecified data, so mask it out of the cross-row min/max;
    # the global min/max + clip happens in the XLA epilogue on the [R, 1] result.
    rows = (pl.program_id(0) * ray_tile
            + jax.lax.broadcasted_iota(jnp.int32, steps.shape, 0))
    valid = rows < num_valid_rays
    big = jnp.float32(jnp.finfo(jnp.float32).max)
    min_ref[...] = jnp.broadcast_to(
        jnp.min(jnp.where(valid, steps, big), keepdims=True), min_ref.shape)
    max_ref[...] = jnp.broadcast_to(
        jnp.max(jnp.where(valid, steps, -big), keepdims=True), max_ref.shape)


# --------------------------- sizing heuristics -------------------------------


def _vmem_capacity_bytes():
    try:
        info = pltpu.get_tpu_info()
        for name in ("vmem_capacity_bytes", "vmem_bytes", "vmem_size_bytes"):
            cap = getattr(info, name, None)
            if cap:
                return int(cap)
    except Exception:
        pass
    return 64 << 20  # conservative: v7x per-TensorCore VMEM


def _tri_block_spec(num_samples):
    """BlockSpec for the grid-constant triangular matrix.

    It never changes block index, so single-buffer it (pipeline_mode=Buffered(1))
    when it is big enough for the second pipeline buffer to matter; for tiny S
    the default double buffer is free and avoids any feature dependence.
    Returns (spec, buffer_count_for_accounting).
    """
    if hasattr(pl, "Buffered") and num_samples >= 256:
        try:
            return pl.BlockSpec((num_samples, num_samples), lambda i: (0, 0),
                                pipeline_mode=pl.Buffered(1)), 1
        except TypeError:
            pass
    return pl.BlockSpec((num_samples, num_samples), lambda i: (0, 0)), 2


def _choose_ray_tile(num_rays, num_samples, in_bytes_per_elem, method,
                     tri_buffers, vmem_cap):
    """HBM-bound kernel: biggest ray block fitting the per-generation VMEM budget,
    while keeping enough grid steps to fill both v7x TensorCores' pipelines."""
    s_pad = _round_up(num_samples, 128)                     # lane padding aware
    # Double-buffered streaming budget: larger on 128-MiB v5e/v6e, tighter on
    # 64-MiB v7x.
    budget = (36 << 20) if vmem_cap >= (96 << 20) else (20 << 20)
    if method == "median":
        budget -= tri_buffers * s_pad * s_pad * 2           # resident bf16 tri
    budget = max(budget, 4 << 20)

    per_ray = (2 * in_bytes_per_elem * s_pad                # 3 inputs, 2 buffers
               + 4 * s_pad * 4                              # f32 intermediates
               + 2 * 128 * 4)                               # (tile,1) out, lane-padded
    tile = max(32, min(2048, (budget // per_ray) // 32 * 32))
    # Never allocate blocks for more rows than exist (multiple of 32 keeps
    # sublane packing happy for 32/16/8-bit inputs).
    tile = min(tile, _round_up(num_rays, 32))

    if num_rays > tile:
        # Target >= 8 grid tiles (>= 3-4 steps per TensorCore on dual-core v7x)
        # so the double buffer actually overlaps, but keep each input block
        # >= ~4 MiB so the ~0.35us per-step overhead stays <~10%.
        floor_rows = max(32, _round_up((4 << 20) // max(1, in_bytes_per_elem * s_pad), 32))
        steps_rows = _round_up(pl.cdiv(num_rays, 8), 32)
        tile = min(tile, max(floor_rows, steps_rows))

    # Prefer an even tile count so neither v7x core gets an extra step.
    n_tiles = pl.cdiv(num_rays, tile)
    if n_tiles > 1 and n_tiles % 2:
        alt = _round_up(pl.cdiv(num_rays, n_tiles + 1), 32)
        if alt >= 32 and pl.cdiv(num_rays, alt) % 2 == 0:
            tile = alt
    return int(tile)


def _vmem_limit_bytes(tile, num_samples, in_bytes_per_elem, method,
                      tri_buffers, vmem_cap):
    s_pad = _round_up(num_samples, 128)                     # lane padding aware
    need = 2 * tile * s_pad * in_bytes_per_elem             # double-buffered inputs
    need += 4 * tile * s_pad * 4                            # f32 intermediates
    need += 2 * tile * 128 * 4                              # (tile,1) output, lane-padded
    if method == "median":
        need += tri_buffers * s_pad * s_pad * 2             # bf16 triangular matrix
    else:
        need += 2 * 2 * 8 * 128 * 4                         # per-tile min/max blocks
    need += 4 << 20                                         # compiler scratch slack
    # Above v5e's 16 MiB scoped default; cap at 3/4 of physical VMEM for the
    # generation we are on (48 MiB on v7x, 96 MiB on v5e/v6e).
    cap = (3 * vmem_cap) // 4
    return int(min(max(need, 32 << 20), cap))


# ------------------------------- wrapper -------------------------------------


@functools.partial(jax.jit, static_argnames=("method", "ray_tile"))
def depth_renderer(weights, starts, ends, factor_depth_coords,
                   method="median", ray_tile=None):
    """weights/starts/ends: [R, S, 1]; factor_depth_coords: [R, S, 1]; returns [R, 1]."""
    R, S, _ = weights.shape

    # Native dtype all the way to VMEM (cast happens on the tile inside the kernel).
    w2 = weights[..., 0]                                    # [R, S]
    s2 = starts[..., 0]                                     # [R, S]
    e2 = ends[..., 0]                                       # [R, S]
    factor = factor_depth_coords[:, 0]                      # [R, 1]

    in_bytes = (jnp.dtype(w2.dtype).itemsize + jnp.dtype(s2.dtype).itemsize
                + jnp.dtype(e2.dtype).itemsize)
    vmem_cap = _vmem_capacity_bytes()

    if method == "median":
        tri_spec, tri_bufs = _tri_block_spec(S)
    else:
        tri_spec, tri_bufs = None, 0

    tile = ray_tile if ray_tile is not None else _choose_ray_tile(
        R, S, in_bytes, method, tri_bufs, vmem_cap)
    num_tiles = pl.cdiv(R, tile)

    grid = (num_tiles,)
    rs_spec = pl.BlockSpec((tile, S), lambda i: (i, 0))
    r1_spec = pl.BlockSpec((tile, 1), lambda i: (i, 0))
    cparams = pltpu.CompilerParams(
        dimension_semantics=("parallel",),
        vmem_limit_bytes=_vmem_limit_bytes(tile, S, in_bytes, method,
                                           tri_bufs, vmem_cap),
    )

    if method == "median":
        # Grid-constant lower-triangular matrix; exact 0/1 in bf16 so the
        # split-operand dot reproduces the f32 cumsum.
        col = jnp.arange(S, dtype=jnp.int32)
        tri = (col[:, None] <= col[None, :]).astype(jnp.bfloat16)   # (S, S)
        ray_depth = pl.pallas_call(
            _median_kernel,
            grid=grid,
            in_specs=[tri_spec, rs_spec, rs_spec, rs_spec],
            out_specs=r1_spec,
            out_shape=jax.ShapeDtypeStruct((R, 1), jnp.float32),
            compiler_params=cparams,
        )(tri, w2, s2, e2)
    elif method == "expected":
        kern = functools.partial(_expected_kernel, num_valid_rays=R, ray_tile=tile)
        depth, min_t, max_t = pl.pallas_call(
            kern,
            grid=grid,
            in_specs=[rs_spec, rs_spec, rs_spec],
            out_specs=(r1_spec,
                       pl.BlockSpec((8, 128), lambda i: (i, 0)),
                       pl.BlockSpec((8, 128), lambda i: (i, 0))),
            out_shape=(jax.ShapeDtypeStruct((R, 1), jnp.float32),
                       jax.ShapeDtypeStruct((num_tiles * 8, 128), jnp.float32),
                       jax.ShapeDtypeStruct((num_tiles * 8, 128), jnp.float32)),
            compiler_params=cparams,
        )(w2, s2, e2)
        ray_depth = jnp.clip(depth, jnp.min(min_t), jnp.max(max_t))
    else:
        raise NotImplementedError(f"Method {method} not implemented")

    # Cheap XLA epilogue on the tiny [R, 1] result: factor multiply stays out of
    # the pipelined kernel so no lane-sparse (tile, 1) factor block enters VMEM.
    return ray_depth * factor


# ------------------------------ reference ------------------------------------


def _reference(weights, starts, ends, factor_depth_coords, method):
    """Pure-JAX reference mirroring the PyTorch forward."""
    steps = (starts + ends) / 2.0                           # [R, S, 1]
    factor = factor_depth_coords[:, 0]                      # [R, 1]
    if method == "median":
        cum = jnp.cumsum(weights[..., 0], axis=-1)          # [R, S]
        idx = jnp.sum((cum < 0.5).astype(jnp.int32), axis=-1, keepdims=True)
        idx = jnp.clip(idx, 0, steps.shape[-2] - 1)
        ray_depth = jnp.take_along_axis(steps[..., 0], idx, axis=-1)  # [R, 1]
    else:
        eps = 1e-10
        depth = jnp.sum(weights * steps, axis=-2) / (jnp.sum(weights, -2) + eps)
        ray_depth = jnp.clip(depth, steps.min(), steps.max())
    return ray_depth * factor


if __name__ == "__main__":
    key = jax.random.PRNGKey(0)

    ok = True
    # Second case (R=13) exercises the ragged-tail (partial block + in-kernel mask) path.
    for (R, S) in ((16, 8), (13, 8)):
        k1, k2, k3 = jax.random.split(jax.random.fold_in(key, R), 3)

        raw_w = jax.random.uniform(k1, (R, S, 1), dtype=jnp.float32)
        weights = raw_w / jnp.sum(raw_w, axis=-2, keepdims=True)   # >=0, sums to 1

        base = jnp.linspace(0.1, 2.0, S, dtype=jnp.float32)[None, :, None]
        starts = jnp.broadcast_to(base, (R, S, 1)) + 0.01 * jax.random.uniform(
            k2, (R, S, 1), dtype=jnp.float32)
        ends = starts + 0.1

        factor_depth_coords = 1.0 + 0.05 * jax.random.uniform(
            k3, (R, S, 1), dtype=jnp.float32)

        for method in ("median", "expected"):
            out = depth_renderer(weights, starts, ends, factor_depth_coords,
                                 method=method)
            out = jax.block_until_ready(out)
            ref = _reference(weights, starts, ends, factor_depth_coords, method)
            if out.shape != (R, 1) or not bool(
                    jnp.allclose(out, ref, atol=1e-5, rtol=1e-5)):
                ok = False

    if ok:
        print("KERNEL_OK")
</pallas_src>

<mosaic_0001>
module attributes {stable_mosaic.version = 11 : i64} {
  func.func @_median_kernel(%arg0: i32, %arg1: memref<8x8xbf16, #tpu.memory_space<vmem>>, %arg2: memref<32x8xf32, #tpu.memory_space<vmem>>, %arg3: memref<32x8xf32, #tpu.memory_space<vmem>>, %arg4: memref<32x8xf32, #tpu.memory_space<vmem>>, %arg5: memref<32x1xf32, #tpu.memory_space<vmem>>) attributes {dimension_semantics = [#tpu.dimension_semantics<parallel>], iteration_bounds = array<i64: 1>, scalar_prefetch = 0 : i64, scratch_operands = 0 : i64, tpu.core_type = #tpu.core_type<tc>, window_params = [{pipeline_mode = #tpu.pipeline_mode<synchronous>, transform_indices = @transform_0, window_bounds = array<i64: 8, 8>}, {transform_indices = @transform_1, window_bounds = array<i64: 32, 8>}, {transform_indices = @transform_2, window_bounds = array<i64: 32, 8>}, {transform_indices = @transform_3, window_bounds = array<i64: 32, 8>}, {transform_indices = @transform_4, window_bounds = array<i64: 32, 1>}]} {
    %c0 = arith.constant 0 : index
    %c0_0 = arith.constant 0 : index
    %0 = vector.load %arg2[%c0, %c0_0] : memref<32x8xf32, #tpu.memory_space<vmem>>, vector<32x8xf32>
    %c0_1 = arith.constant 0 : index
    %c0_2 = arith.constant 0 : index
    %1 = vector.load %arg3[%c0_1, %c0_2] : memref<32x8xf32, #tpu.memory_space<vmem>>, vector<32x8xf32>
    %c0_3 = arith.constant 0 : index
    %c0_4 = arith.constant 0 : index
    %2 = vector.load %arg4[%c0_3, %c0_4] : memref<32x8xf32, #tpu.memory_space<vmem>>, vector<32x8xf32>
    %3 = arith.addf %1, %2 : vector<32x8xf32>
    %cst = arith.constant 5.000000e-01 : f32
    %4 = vector.broadcast %cst : f32 to vector<32x8xf32>
    %5 = arith.mulf %3, %4 : vector<32x8xf32>
    %c0_5 = arith.constant 0 : index
    %c0_6 = arith.constant 0 : index
    %6 = vector.load %arg1[%c0_5, %c0_6] : memref<8x8xbf16, #tpu.memory_space<vmem>>, vector<8x8xbf16>
    %7 = arith.truncf %0 : vector<32x8xf32> to vector<32x8xbf16>
    %8 = arith.extf %7 : vector<32x8xbf16> to vector<32x8xf32>
    %9 = arith.subf %0, %8 : vector<32x8xf32>
    %10 = arith.truncf %9 : vector<32x8xf32> to vector<32x8xbf16>
    %cst_7 = arith.constant dense<0.000000e+00> : vector<32x8xf32>
    %11 = tpu.matmul %7, %6, %cst_7 {dimension_numbers = #tpu.dot_dimension_numbers<[1], [0], [0], [1], [0, 0, 1, 1], [], []>} : vector<32x8xbf16>, vector<8x8xbf16>, vector<32x8xf32> -> vector<32x8xf32>
    %cst_8 = arith.constant dense<0.000000e+00> : vector<32x8xf32>
    %12 = tpu.matmul %10, %6, %cst_8 {dimension_numbers = #tpu.dot_dimension_numbers<[1], [0], [0], [1], [0, 0, 1, 1], [], []>} : vector<32x8xbf16>, vector<8x8xbf16>, vector<32x8xf32> -> vector<32x8xf32>
    %13 = arith.addf %11, %12 : vector<32x8xf32>
    %cst_9 = arith.constant 5.000000e-01 : f32
    %14 = vector.broadcast %cst_9 : f32 to vector<32x8xf32>
    %15 = arith.cmpf olt, %13, %14 : vector<32x8xf32>
    %16 = arith.extui %15 : vector<32x8xi1> to vector<32x8xi32>
    %cst_10 = arith.constant dense<0> : vector<32xi32>
    %17 = vector.multi_reduction <add>, %16, %cst_10 [1] : vector<32x8xi32> to vector<32xi32>
    %18 = vector.shape_cast %17 : vector<32xi32> to vector<32x1xi32>
    %c0_i32 = arith.constant 0 : i32
    %c7_i32 = arith.constant 7 : i32
    %19 = vector.broadcast %c0_i32 : i32 to vector<32x1xi32>
    %20 = arith.maxsi %19, %18 : vector<32x1xi32>
    %21 = vector.broadcast %c7_i32 : i32 to vector<32x1xi32>
    %22 = arith.minsi %21, %20 : vector<32x1xi32>
    %23 = tpu.iota {dimensions = array<i32: 1>} : vector<32x8xi32>
    %24 = vector.broadcast %22 : vector<32x1xi32> to vector<32x8xi32>
    %25 = arith.cmpi eq, %23, %24 : vector<32x8xi32>
    %26 = arith.extui %25 : vector<32x8xi1> to vector<32x8xi32>
    %27 = arith.sitofp %26 : vector<32x8xi32> to vector<32x8xf32>
    %28 = arith.mulf %5, %27 : vector<32x8xf32>
    %cst_11 = arith.constant dense<0.000000e+00> : vector<32xf32>
    %29 = vector.multi_reduction <add>, %28, %cst_11 [1] : vector<32x8xf32> to vector<32xf32>
    %30 = vector.shape_cast %29 : vector<32xf32> to vector<32x1xf32>
    %c0_12 = arith.constant 0 : index
    %c0_13 = arith.constant 0 : index
    %31 = vector.load %arg5[%c0_12, %c0_13] : memref<32x1xf32, #tpu.memory_space<vmem>>, vector<32x1xf32>
    tpu.vector_store %arg5[%c0_12, %c0_13], %30 {strides = array<i32>} : memref<32x1xf32, #tpu.memory_space<vmem>>, vector<32x1xf32>,
    return
  }
  func.func @transform_0(%arg0: i32) -> (i32, i32) {
    %c0_i32 = arith.constant 0 : i32
    %c0_i32_0 = arith.constant 0 : i32
    %c0_i32_1 = arith.constant 0 : i32
    return %c0_i32, %c0_i32_0 : i32, i32
  }
  func.func @transform_1(%arg0: i32) -> (i32, i32) {
    %c0_i32 = arith.constant 0 : i32
    %c0_i32_0 = arith.constant 0 : i32
    return %arg0, %c0_i32 : i32, i32
  }
  func.func @transform_2(%arg0: i32) -> (i32, i32) {
    %c0_i32 = arith.constant 0 : i32
    %c0_i32_0 = arith.constant 0 : i32
    return %arg0, %c0_i32 : i32, i32
  }
  func.func @transform_3(%arg0: i32) -> (i32, i32) {
    %c0_i32 = arith.constant 0 : i32
    %c0_i32_0 = arith.constant 0 : i32
    return %arg0, %c0_i32 : i32, i32
  }
  func.func @transform_4(%arg0: i32) -> (i32, i32) {
    %c0_i32 = arith.constant 0 : i32
    %c0_i32_0 = arith.constant 0 : i32
    return %arg0, %c0_i32 : i32, i32
  }
}

</mosaic_0001>

<llo_original>
// kernel: mul.1
$region0: #{mul.1}
  #allocation0 [shape = 's32[1]{0}', space=sflag, size = 0x4, scoped, tag = 'scoped memory for mul.1']
  %s0 = inlined_call_operand.vmem [shape: f32[16,1], index: 0, kind: input, shape index: {}]
  %s1 = inlined_call_operand.vmem [shape: f32[16,1], index: 1, kind: input, shape index: {}]
  %s2 = inlined_call_operand.vmem [shape: f32[16,1], index: 2, kind: output, shape index: {}]
  %v3 = vld [vmem:[%s0] sm:$0xff]
  %v4 = vld [vmem:[%s1] sm:$0xff]
  %5 = xla_tuple %v3, %v4
  %6 = xla_tuple %5
  %v7 = vmul.f32 %v3, %v4
  %8 = xla_tuple %v7
  %9 = vst [vmem:[%s2] sm:$0xff] %v7
  %s10 = scalar_lea.vmem %s0, 8
  %v11 = vld [vmem:[%s10] sm:$0xff]
  %s12 = scalar_lea.vmem %s1, 8
  %v13 = vld [vmem:[%s12] sm:$0xff]
  %14 = xla_tuple %v11, %v13
  %15 = xla_tuple %14
  %v16 = vmul.f32 %v11, %v13
  %17 = xla_tuple %v16
  %s18 = scalar_lea.vmem %s2, 8
  %19 = vst [vmem:[%s18] sm:$0xff] %v16

// kernel: depth_renderer.1
$region0: #{depth_renderer.1}
  #allocation0 [shape = 'u32[]', space=smem, size = 0x4, offset = 0x4, fixed_abs, tag = 'smem constant byte address 0x4 - core index']
  #allocation1 [shape = 'u32[144,128]{1,0:T(1,128)}', space=vmem, size = 0x12000, scoped, tag = 'internal scratch']
  %s0 = inlined_call_operand.vmem [shape: bf16[8,8], index: 0, kind: input, shape index: {}]
  %s1 = inlined_call_operand.vmem [shape: f32[16,8], index: 1, kind: input, shape index: {}]
  %s2 = inlined_call_operand.vmem [shape: f32[16,8], index: 2, kind: input, shape index: {}]
  %s3 = inlined_call_operand.vmem [shape: f32[16,8], index: 3, kind: input, shape index: {}]
  %s4 = inlined_call_operand.vmem [shape: f32[16,1], index: 4, kind: output, shape index: {}]
  %s5 = sld [smem:[#allocation0]]
  $region60: #{depth_renderer.1} parent=0
    _
  %s7 = ssub.s32 1, %s5
  %s8 = scalar_select 0, %s7, %s5
  $region1: #{depth_renderer.1} parent=0
    #allocation2 [shape = 'u8[16384]{0}', space=vmem, size = 0x4000, scoped, tag = 'output window, operand 0, single buffered']
    // Predicated region
    $region2: #{depth_renderer.1} parent=1 // pred_check
      _
    $region3: #{depth_renderer.1} parent=1 // pred_check_branch
      %10 = sbr.rel (0) target = $region5
    $region4: #{depth_renderer.1} parent=1 // pred_region
      _
    $region5: #{depth_renderer.1} parent=1 // pred_fallthru
      _
    // Predicated region
    $region6: #{depth_renderer.1} parent=1 // pred_check
      _
    $region7: #{depth_renderer.1} parent=1 // pred_check_branch
      %12 = sbr.rel (0) target = $region9
    $region8: #{depth_renderer.1} parent=1 // pred_region
      _
    $region9: #{depth_renderer.1} parent=1 // pred_fallthru
      _
    // Predicated region
    $region10: #{depth_renderer.1} parent=1 // pred_check
      _
    $region11: #{depth_renderer.1} parent=1 // pred_check_branch
      %14 = sbr.rel (0) target = $region13
    $region12: #{depth_renderer.1} parent=1 // pred_region
      _
    $region13: #{depth_renderer.1} parent=1 // pred_fallthru
      _
    // Predicated region
    $region14: #{depth_renderer.1} parent=1 // pred_check
      _
    $region15: #{depth_renderer.1} parent=1 // pred_check_branch
      %16 = sbr.rel (0) target = $region17
    $region16: #{depth_renderer.1} parent=1 // pred_region
      _
    $region17: #{depth_renderer.1} parent=1 // pred_fallthru
      _
    %v18 = vld [vmem:[%s1] sm:$0xff]
    %v19 = vld [vmem:[%s1 + $0x8] sm:$0xff]
    %v20 = vld [vmem:[%s1 + $0x10] sm:$0xff]
    %v21 = vld [vmem:[%s1 + $0x18] sm:$0xff]
    %v22 = vld [vmem:[%s2] sm:$0xff]
    %v23 = vld [vmem:[%s2 + $0x8] sm:$0xff]
    %v24 = vld [vmem:[%s2 + $0x10] sm:$0xff]
    %v25 = vld [vmem:[%s2 + $0x18] sm:$0xff]
    %v26 = vld [vmem:[%s3] sm:$0xff]
    %v27 = vld [vmem:[%s3 + $0x8] sm:$0xff]
    %v28 = vld [vmem:[%s3 + $0x10] sm:$0xff]
    %v29 = vld [vmem:[%s3 + $0x18] sm:$0xff]
    %v30 = vadd.f32 %v22, %v26
    %v31 = vadd.f32 %v23, %v27
    %v32 = vadd.f32 %v24, %v28
    %v33 = vadd.f32 %v25, %v29
    %v34 = vmul.f32 %v30, 0.5
    %v35 = vmul.f32 %v31, 0.5
    %v36 = vmul.f32 %v32, 0.5
    %v37 = vmul.f32 %v33, 0.5
    %v38 = vld [vmem:[%s0] sm:$0xf]
    %v39 = vpack.c.bf16 %v19, %v18
    %v40 = vpack.c.bf16 %v21, %v20
    %v41 = vunpack.c.l.bf16 %v39
    %v42 = vunpack.c.h.bf16 %v39
    %v43 = vunpack.c.l.bf16 %v40
    %v44 = vunpack.c.h.bf16 %v40
    %v45 = vsub.f32 %v18, %v41
    %v46 = vsub.f32 %v19, %v42
    %v47 = vsub.f32 %v20, %v43
    %v48 = vsub.f32 %v21, %v44
    %v49 = vpack.c.bf16 %v46, %v45
    %v50 = vpack.c.bf16 %v48, %v47
    %vm51 = vcmask 64512
    %v53 = vsel %vm51, %v49, 0
    %v56 = vsel %vm51, %v50, 0
    %vm58 = vcmask 1043456
    %v60 = vsel %vm58, %v38, 0
    %62 = vmatprep.subr.bf16.mxu0 0
    %63 = vmatpush1.bf16.msra.mxu0 %v60
    %64 = vmatprep.subr.bf16.mxu0 0
    %65 = vmatpush1.bf16.msra.mxu0 0
    %66 = vmatprep.subr.bf16.mxu0 0
    %67 = vmatpush1.bf16.msra.mxu0 0
    %68 = vmatprep.subr.bf16.mxu0 0
    %69 = vmatpush1.bf16.msra.mxu0 0
    %70 = vmatprep.subr.bf16.mxu0 0
    %71 = vmatpush1.bf16.msra.mxu0 0
    %72 = vmatprep.subr.bf16.mxu0 0
    %73 = vmatpush1.bf16.msra.mxu0 0
    %74 = vmatprep.subr.bf16.mxu0 0
    %75 = vmatpush1.bf16.msra.mxu0 0
    %76 = vmatprep.subr.bf16.mxu0 0
    %77 = vmatpush1.bf16.msra.mxu0 0
    %78 = vmatprep.subr.bf16.mxu0 0
    %79 = vmatpush1.bf16.msra.mxu0 0
    %80 = vmatprep.subr.bf16.mxu0 0
    %81 = vmatpush1.bf16.msra.mxu0 0
    %82 = vmatprep.subr.bf16.mxu0 0
    %83 = vmatpush1.bf16.msra.mxu0 0
    %84 = vmatprep.subr.bf16.mxu0 0
    %85 = vmatpush1.bf16.msra.mxu0 0
    %86 = vmatprep.subr.bf16.mxu0 0
    %87 = vmatpush1.bf16.msra.mxu0 0
    %88 = vmatprep.subr.bf16.mxu0 0
    %89 = vmatpush1.bf16.msra.mxu0 0
    %90 = vmatprep.subr.bf16.mxu0 0
    %91 = vmatpush1.bf16.msra.mxu0 0
    %92 = vmatprep.subr.bf16.mxu0 0
    %93 = vmatpush1.bf16.msra.mxu0 0
    %94 = vmatprep.mubr.bf16.mxu0 0
    %95 = vmatmul.mubr.bf16.gmra.mrb[0].mxu0 %v53
    %v96 = vpop.f32.mrb[0].mxu0
    %v97 = vadd.f32 0.0, %v96
    %v98 = vpop.f32.mrb[0].mxu0
    %v99 = vpop.f32.mrb[0].mxu0
    %v100 = vadd.f32 0.0, %v99
    %v101 = vpop.f32.mrb[0].mxu0
    %102 = vmatprep.mubr.bf16.mxu0 0
    %103 = vmatmul.mubr.bf16.gmra.mrb[0].mxu0 %v56
    %v104 = vpop.f32.mrb[0].mxu0
    %v105 = vadd.f32 0.0, %v104
    %v106 = vpop.f32.mrb[0].mxu0
    %v107 = vpop.f32.mrb[0].mxu0
    %v108 = vadd.f32 0.0, %v107
    %v109 = vpop.f32.mrb[0].mxu0
    %110 = vdwg.mxu0
    %v112 = vsel %vm51, %v39, 0
    %v115 = vsel %vm51, %v40, 0
    %117 = vmatprep.subr.bf16.mxu0 0
    %118 = vmatpush1.bf16.msra.mxu0 %v60
    %119 = vmatprep.subr.bf16.mxu0 0
    %120 = vmatpush1.bf16.msra.mxu0 0
    %121 = vmatprep.subr.bf16.mxu0 0
    %122 = vmatpush1.bf16.msra.mxu0 0
    %123 = vmatprep.subr.bf16.mxu0 0
    %124 = vmatpush1.bf16.msra.mxu0 0
    %125 = vmatprep.subr.bf16.mxu0 0
    %126 = vmatpush1.bf16.msra.mxu0 0
    %127 = vmatprep.subr.bf16.mxu0 0
    %128 = vmatpush1.bf16.msra.mxu0 0
    %129 = vmatprep.subr.bf16.mxu0 0
    %130 = vmatpush1.bf16.msra.mxu0 0
    %131 = vmatprep.subr.bf16.mxu0 0
    %132 = vmatpush1.bf16.msra.mxu0 0
    %133 = vmatprep.subr.bf16.mxu0 0
    %134 = vmatpush1.bf16.msra.mxu0 0
    %135 = vmatprep.subr.bf16.mxu0 0
    %136 = vmatpush1.bf16.msra.mxu0 0
    %137 = vmatprep.subr.bf16.mxu0 0
    %138 = vmatpush1.bf16.msra.mxu0 0
    %139 = vmatprep.subr.bf16.mxu0 0
    %140 = vmatpush1.bf16.msra.mxu0 0
    %141 = vmatprep.subr.bf16.mxu0 0
    %142 = vmatpush1.bf16.msra.mxu0 0
    %143 = vmatprep.subr.bf16.mxu0 0
    %144 = vmatpush1.bf16.msra.mxu0 0
    %145 = vmatprep.subr.bf16.mxu0 0
    %146 = vmatpush1.bf16.msra.mxu0 0
    %147 = vmatprep.subr.bf16.mxu0 0
    %148 = vmatpush1.bf16.msra.mxu0 0
    %149 = vmatprep.mubr.bf16.mxu0 0
    %150 = vmatmul.mubr.bf16.gmra.mrb[0].mxu0 %v112
    %v151 = vpop.f32.mrb[0].mxu0
    %v152 = vadd.f32 %v97, %v151
    %v153 = vpop.f32.mrb[0].mxu0
    %v154 = vpop.f32.mrb[0].mxu0
    %v155 = vadd.f32 %v100, %v154
    %v156 = vpop.f32.mrb[0].mxu0
    %157 = vmatprep.mubr.bf16.mxu0 0
    %158 = vmatmul.mubr.bf16.gmra.mrb[0].mxu0 %v115
    %v159 = vpop.f32.mrb[0].mxu0
    %v160 = vadd.f32 %v105, %v159
    %v161 = vpop.f32.mrb[0].mxu0
    %v162 = vpop.f32.mrb[0].mxu0
    %v163 = vadd.f32 %v108, %v162
    %v164 = vpop.f32.mrb[0].mxu0
    %165 = vdwg.mxu0
    %vm166 = vcmp.lt.f32.partialorder %v152, 0.5
    %vm167 = vcmp.lt.f32.partialorder %v155, 0.5
    %vm168 = vcmp.lt.f32.partialorder %v160, 0.5
    %vm169 = vcmp.lt.f32.partialorder %v163, 0.5
    %v170 = vsel %vm166, 1, 0
    %v171 = vsel %vm167, 1, 0
    %v172 = vsel %vm168, 1, 0
    %v173 = vsel %vm169, 1, 0
    %v174 = vsel %vm51, %v170, 0
    %v175 = vand.u32 %v174, 65535
    %v176 = vshrl.u32 %v174, 16
    %v177 = vcvt.s32.f32 %v175
    %v178 = vcvt.s32.f32 %v176
    %179 = vadd.xlane.f32.xlu0 %v177
    %v180 = vpop.xlane.xlu0 %179
    %181 = vadd.xlane.f32.xlu0 %v178
    %v182 = vpop.xlane.xlu0 %181
    %v183 = vcvt.f32.s32 %v180
    %v184 = vcvt.f32.s32 %v182
    %v185 = vshll.u32 %v184, 16
    %v186 = vadd.s32 %v185, %v183
    %v187 = vsel %vm51, %v171, 0
    %v188 = vand.u32 %v187, 65535
    %v189 = vshrl.u32 %v187, 16
    %v190 = vcvt.s32.f32 %v188
    %v191 = vcvt.s32.f32 %v189
    %192 = vadd.xlane.f32.xlu0 %v190
    %v193 = vpop.xlane.xlu0 %192
    %194 = vadd.xlane.f32.xlu0 %v191
    %v195 = vpop.xlane.xlu0 %194
    %v196 = vcvt.f32.s32 %v193
    %v197 = vcvt.f32.s32 %v195
    %v198 = vshll.u32 %v197, 16
    %v199 = vadd.s32 %v198, %v196
    %v200 = vsel %vm51, %v172, 0
    %v201 = vand.u32 %v200, 65535
    %v202 = vshrl.u32 %v200, 16
    %v203 = vcvt.s32.f32 %v201
    %v204 = vcvt.s32.f32 %v202
    %205 = vadd.xlane.f32.xlu0 %v203
    %v206 = vpop.xlane.xlu0 %205
    %207 = vadd.xlane.f32.xlu0 %v204
    %v208 = vpop.xlane.xlu0 %207
    %v209 = vcvt.f32.s32 %v206
    %v210 = vcvt.f32.s32 %v208
    %v211 = vshll.u32 %v210, 16
    %v212 = vadd.s32 %v211, %v209
    %v213 = vsel %vm51, %v173, 0
    %v214 = vand.u32 %v213, 65535
    %v215 = vshrl.u32 %v213, 16
    %v216 = vcvt.s32.f32 %v214
    %v217 = vcvt.s32.f32 %v215
    %218 = vadd.xlane.f32.xlu0 %v216
    %v219 = vpop.xlane.xlu0 %218
    %220 = vadd.xlane.f32.xlu0 %v217
    %v221 = vpop.xlane.xlu0 %220
    %v222 = vcvt.f32.s32 %v219
    %v223 = vcvt.f32.s32 %v221
    %v224 = vshll.u32 %v223, 16
    %v225 = vadd.s32 %v224, %v222
    %vm226 = vcmp.gt.s32.totalorder %v186, 0
    %v227 = vsel %vm226, %v186, 0
    %vm228 = vcmp.gt.s32.totalorder %v199, 0
    %v229 = vsel %vm228, %v199, 0
    %vm230 = vcmp.gt.s32.totalorder %v212, 0
    %v231 = vsel %vm230, %v212, 0
    %vm232 = vcmp.gt.s32.totalorder %v225, 0
    %v233 = vsel %vm232, %v225, 0
    %vm234 = vcmp.lt.s32.totalorder %v227, 7
    %v235 = vsel %vm234, %v227, 7
    %vm236 = vcmp.lt.s32.totalorder %v229, 7
    %v237 = vsel %vm236, %v229, 7
    %vm238 = vcmp.lt.s32.totalorder %v231, 7
    %v239 = vsel %vm238, %v231, 7
    %vm240 = vcmp.lt.s32.totalorder %v233, 7
    %v241 = vsel %vm240, %v233, 7
    %v242 = vlaneseq
    %v243 = vand.u32 %v242, 127
    %vm244 = vcmp.eq.s32.totalorder %v243, %v235
    %vm245 = vcmp.eq.s32.totalorder %v243, %v237
    %vm246 = vcmp.eq.s32.totalorder %v243, %v239
    %vm247 = vcmp.eq.s32.totalorder %v243, %v241
    %v248 = vsel %vm244, 1, 0
    %v249 = vsel %vm245, 1, 0
    %v250 = vsel %vm246, 1, 0
    %v251 = vsel %vm247, 1, 0
    %v252 = vcvt.s32.f32 %v248
    %v253 = vcvt.s32.f32 %v249
    %v254 = vcvt.s32.f32 %v250
    %v255 = vcvt.s32.f32 %v251
    %v256 = vmul.f32 %v34, %v252
    %v257 = vmul.f32 %v35, %v253
    %v258 = vmul.f32 %v36, %v254
    %v259 = vmul.f32 %v37, %v255
    %v260 = vsel %vm51, %v256, 0.0
    %261 = vadd.xlane.f32.xlu0 %v260
    %v262 = vpop.xlane.xlu0 %261
    %v263 = vsel %vm51, %v257, 0.0
    %264 = vadd.xlane.f32.xlu0 %v263
    %v265 = vpop.xlane.xlu0 %264
    %v266 = vsel %vm51, %v258, 0.0
    %267 = vadd.xlane.f32.xlu0 %v266
    %v268 = vpop.xlane.xlu0 %267
    %v269 = vsel %vm51, %v259, 0.0
    %270 = vadd.xlane.f32.xlu0 %v269
    %v271 = vpop.xlane.xlu0 %270
    %vm272 = vcmask 7168
    %273 = vst.msk [vmem:[#allocation2] sm:$0xff] %vm272, %v262
    %274 = vst.msk [vmem:[#allocation2 + $0x8] sm:$0xff] %vm272, %v265
    %275 = vst.msk [vmem:[#allocation2 + $0x10] sm:$0xff] %vm272, %v268
    %276 = vst.msk [vmem:[#allocation2 + $0x18] sm:$0xff] %vm272, %v271
    // Predicated region
    $region18: #{depth_renderer.1} parent=1 // pred_check
      _
    $region19: #{depth_renderer.1} parent=1 // pred_check_branch
      %278 = sbr.rel (0) target = $region21
    $region20: #{depth_renderer.1} parent=1 // pred_region
      // Predicated region
      $region22: #{depth_renderer.1} parent=20 // pred_check
        _
      $region23: #{depth_renderer.1} parent=20 // pred_check_branch
        %280 = sbr.rel (0) target = $region25
      $region24: #{depth_renderer.1} parent=20 // pred_region
        // Predicated region
        $region26: #{depth_renderer.1} parent=24 // pred_check
          _
        $region27: #{depth_renderer.1} parent=24 // pred_check_branch
          %282 = sbr.rel (0) target = $region29
        $region28: #{depth_renderer.1} parent=24 // pred_region
          // Predicated region
          $region41: #{depth_renderer.1} parent=28 // pred_check
            _
          $region42: #{depth_renderer.1} parent=28 // pred_check_branch
            %299 = sbr.rel (0) target = $region44
          $region43: #{depth_renderer.1} parent=28 // pred_region
            loop: start=0, step=1, limit=1
            $region45: #{depth_renderer.1} parent=43 // loop_pre_header
              _
            $region46: #{depth_renderer.1} parent=43 // loop_header
              %s301 = sphi 0, %s305
              %p302 = scmp.ge.s32.totalorder %s301, 1
              %s306 = sphi [#allocation2], [#allocation2]
              %s307 = sphi %s4, %s4
            $region47: #{depth_renderer.1} parent=43 // loop_header_branch
              %304 = sbr.rel (%p302) target = $region51
            $region48: #{depth_renderer.1} parent=43 // loop_body
              %v308 = vld [vmem:[%s306] sm:$0xff]
              %309 = vst [vmem:[%s307] sm:$0xff] %v308
              %v310 = vld [vmem:[%s306 + $0x8] sm:$0xff]
              %311 = vst [vmem:[%s307 + $0x8] sm:$0xff] %v310
            $region49: #{depth_renderer.1} parent=43 // loop_footer
              %s305 = sadd.s32 1, %s301
            $region50: #{depth_renderer.1} parent=43 // loop_footer_branch
              %300 = sbr.rel target = $region46
            $region51: #{depth_renderer.1} parent=43 // loop_exit
              _
          $region44: #{depth_renderer.1} parent=28 // pred_fallthru
            _
          // Predicated region
          $region52: #{depth_renderer.1} parent=28 // pred_check
            _
          $region53: #{depth_renderer.1} parent=28 // pred_check_branch
            %313 = sbr.rel target = $region55
          $region54: #{depth_renderer.1} parent=28 // pred_region
            _
          $region55: #{depth_renderer.1} parent=28 // pred_fallthru
            _
        $region29: #{depth_renderer.1} parent=24 // pred_fallthru
          _
        // Predicated region
        $region30: #{depth_renderer.1} parent=24 // pred_check
          _
        $region31: #{depth_renderer.1} parent=24 // pred_check_branch
          %284 = sbr.rel target = $region33
        $region32: #{depth_renderer.1} parent=24 // pred_region
          loop: start=0, step=1, limit=1
          $region34: #{depth_renderer.1} parent=32 // loop_pre_header
            _
          $region35: #{depth_renderer.1} parent=32 // loop_header
            %s287 = sphi 0, %s291
            %p288 = scmp.ge.s32.totalorder %s287, 1
            %s292 = sphi [#allocation2], [#allocation2]
            %s293 = sphi %s4, %s4
          $region36: #{depth_renderer.1} parent=32 // loop_header_branch
            %290 = sbr.rel (%p288) target = $region40
          $region37: #{depth_renderer.1} parent=32 // loop_body
            %v294 = vld [vmem:[%s292] sm:$0xff]
            %295 = vst [vmem:[%s293] sm:$0xff] %v294
            %v296 = vld [vmem:[%s292 + $0x8] sm:$0xff]
            %297 = vst [vmem:[%s293 + $0x8] sm:$0xff] %v296
          $region38: #{depth_renderer.1} parent=32 // loop_footer
            %s291 = sadd.s32 1, %s287
          $region39: #{depth_renderer.1} parent=32 // loop_footer_branch
            %286 = sbr.rel target = $region35
          $region40: #{depth_renderer.1} parent=32 // loop_exit
            _
        $region33: #{depth_renderer.1} parent=24 // pred_fallthru
          _
      $region25: #{depth_renderer.1} parent=20 // pred_fallthru
        _
      %314 = vnop
    $region21: #{depth_renderer.1} parent=1 // pred_fallthru
      _
    // Predicated region
    $region56: #{depth_renderer.1} parent=1 // pred_check
      _
    $region57: #{depth_renderer.1} parent=1 // pred_check_branch
      %316 = sbr.rel (0) target = $region59
    $region58: #{depth_renderer.1} parent=1 // pred_region
      _
    $region59: #{depth_renderer.1} parent=1 // pred_fallthru
      _

</llo_original>
